<compile_context>
chip_gen: v5e
topology: v5e:2x2
jax: 0.10.0
libtpu: 0.0.40
codegen_flags: <defaults>
</compile_context>

<pallas_src>
import functools

import jax
import jax.numpy as jnp
from jax.experimental import pallas as pl
from jax.experimental.pallas import tpu as pltpu

_LANE = 128
_SUBLANE = 8


def _round_up(a, b):
    return (a + b - 1) // b * b


def channel_attention_kernel(x_ref, w1_ref, b1_ref, w2_ref, b2_ref, o_ref,
                             acc_ref, *, inv_hw):
    # x_ref:   (1, C, rows_chunk, 128)  zero-padded spatial chunk (HW laid out as rows x 128 lanes)
    # w1_ref:  (hidden, C)   fc1 weight, PyTorch (out, in) layout, resident across the grid
    # b1_ref:  (hidden, 1)
    # w2_ref:  (C, hidden)   fc2 weight, resident across the grid
    # b2_ref:  (C, 1)
    # o_ref:   (1, C, 1)     sigmoid channel attention for batch element i (column form)
    # acc_ref: (C, 128) f32  lane-wide partial-sum accumulator (scratch)
    k = pl.program_id(1)

    @pl.when(k == 0)
    def _init():
        acc_ref[...] = jnp.zeros_like(acc_ref)

    # Steady state: fold this chunk with one sublane-axis reduce; keep the lane axis
    # wide so the (expensive) cross-lane reduce happens once per batch element.
    acc_ref[...] += jnp.sum(x_ref[0].astype(jnp.float32), axis=1)

    @pl.when(k == pl.num_programs(1) - 1)
    def _finalize():
        # Global average pool: single cross-lane reduce, scaled by the true 1/(H*W)
        # (zero padding contributed nothing to the sum).
        gap = jnp.sum(acc_ref[...], axis=-1, keepdims=True) * inv_hw          # (C, 1)
        # fc1 -> ReLU -> fc2 -> sigmoid, column-oriented (no relayouts needed).
        h = jnp.dot(w1_ref[...].astype(jnp.float32), gap,
                    preferred_element_type=jnp.float32)
        h = jnp.maximum(h + b1_ref[...].astype(jnp.float32), 0.0)             # (hidden, 1)
        y = jnp.dot(w2_ref[...].astype(jnp.float32), h,
                    preferred_element_type=jnp.float32)
        y = y + b2_ref[...].astype(jnp.float32)                               # (C, 1)
        o_ref[...] = jax.nn.sigmoid(y).reshape(o_ref.shape).astype(o_ref.dtype)


def channel_attention(x, w1, b1, w2, b2, *, target_chunk_bytes=2 * 1024 * 1024):
    """x: (N, C, H, W); w1: (hidden, C); b1: (hidden,); w2: (C, hidden); b2: (C,)."""
    N, C, H, W = x.shape
    HW = H * W
    hidden = w1.shape[0]
    itemsize = jnp.dtype(x.dtype).itemsize

    # Lay HW out as rows x 128 lanes; chunk along rows in multiples of 8 sublanes,
    # sized so one buffered x tile is a few MiB (double-buffered by the pipeline).
    rows = (HW + _LANE - 1) // _LANE
    target_rows = max(_SUBLANE,
                      (target_chunk_bytes // (C * _LANE * itemsize)) // _SUBLANE * _SUBLANE)
    if rows <= target_rows:
        rows_chunk = rows
        rows_pad = rows
    else:
        rows_chunk = target_rows
        rows_pad = _round_up(rows, rows_chunk)
    num_chunks = rows_pad // rows_chunk
    hw_pad = rows_pad * _LANE

    xf = x.reshape(N, C, HW)
    if hw_pad != HW:
        # Zero padding: contributes 0 to the sum; the mean divides by the true HW.
        xf = jnp.pad(xf, ((0, 0), (0, 0), (0, hw_pad - HW)))
    xf = xf.reshape(N, C, rows_pad, _LANE)

    kernel = functools.partial(channel_attention_kernel, inv_hw=1.0 / HW)

    param_bytes = sum(int(a.size) * jnp.dtype(a.dtype).itemsize for a in (w1, b1, w2, b2))
    cost = pl.CostEstimate(
        flops=int(N * C * HW + 4 * N * C * hidden + N * (C + hidden)),
        transcendentals=int(N * C),
        bytes_accessed=int(xf.size * itemsize + param_bytes + N * C * itemsize),
    )

    out = pl.pallas_call(
        kernel,
        out_shape=jax.ShapeDtypeStruct((N, C, 1), x.dtype),
        grid_spec=pltpu.PrefetchScalarGridSpec(
            num_scalar_prefetch=0,
            grid=(N, num_chunks),
            in_specs=[
                pl.BlockSpec((1, C, rows_chunk, _LANE), lambda i, k: (i, 0, k, 0)),  # streamed x
                pl.BlockSpec((hidden, C), lambda i, k: (0, 0)),                      # resident w1
                pl.BlockSpec((hidden, 1), lambda i, k: (0, 0)),                      # resident b1
                pl.BlockSpec((C, hidden), lambda i, k: (0, 0)),                      # resident w2
                pl.BlockSpec((C, 1), lambda i, k: (0, 0)),                           # resident b2
            ],
            out_specs=pl.BlockSpec((1, C, 1), lambda i, k: (i, 0, 0)),
            scratch_shapes=[pltpu.VMEM((C, _LANE), jnp.float32)],
        ),
        compiler_params=pltpu.CompilerParams(
            dimension_semantics=("parallel", "arbitrary"),
        ),
        cost_estimate=cost,
    )(
        xf,
        w1,                      # (hidden, C)
        b1.reshape(-1, 1),       # (hidden, 1)
        w2,                      # (C, hidden)
        b2.reshape(-1, 1),       # (C, 1)
    )
    # (N, C, 1) -> (N, C, 1, 1): same element order as unsqueeze(2).unsqueeze(3).
    return out.reshape(N, C, 1, 1)


def _reference(x, w1, b1, w2, b2):
    gap = jnp.mean(x, axis=(2, 3))                       # (N, C)
    h = jnp.maximum(gap @ w1.T + b1, 0.0)                # (N, hidden)
    y = jax.nn.sigmoid(h @ w2.T + b2)                    # (N, C)
    return y[:, :, None, None]


if __name__ == "__main__":
    # Small shapes consistent with the module: in_channels divisible by reduction.
    N, C, H, W = 2, 32, 16, 16
    reduction = 16
    hidden = C // reduction

    key = jax.random.PRNGKey(0)
    kx, kw1, kb1, kw2, kb2 = jax.random.split(key, 5)

    x = jax.random.normal(kx, (N, C, H, W), dtype=jnp.float32)

    # PyTorch Linear shapes: weight (out, in), bias (out,).
    bound1 = 1.0 / (C ** 0.5)
    w1 = jax.random.uniform(kw1, (hidden, C), jnp.float32, -bound1, bound1)
    b1 = jax.random.uniform(kb1, (hidden,), jnp.float32, -bound1, bound1)
    bound2 = 1.0 / (hidden ** 0.5)
    w2 = jax.random.uniform(kw2, (C, hidden), jnp.float32, -bound2, bound2)
    b2 = jax.random.uniform(kb2, (C,), jnp.float32, -bound2, bound2)

    out = jax.block_until_ready(channel_attention(x, w1, b1, w2, b2))
    ref = _reference(x, w1, b1, w2, b2)
    assert out.shape == (N, C, 1, 1)
    assert jnp.allclose(out, ref, atol=1e-5, rtol=1e-5)

    # Spatial size not a multiple of 128 exercises the zero-padded chunk path
    # (padding excluded from the mean).
    x2 = jax.random.normal(jax.random.PRNGKey(1), (N, C, 13, 13), dtype=jnp.float32)
    out2 = jax.block_until_ready(channel_attention(x2, w1, b1, w2, b2))
    assert jnp.allclose(out2, _reference(x2, w1, b1, w2, b2), atol=1e-5, rtol=1e-5)

    print("KERNEL_OK")
</pallas_src>

<mosaic_0001>
module attributes {stable_mosaic.version = 11 : i64} {
  func.func @channel_attention_kernel(%arg0: i32, %arg1: i32, %arg2: memref<1x32x2x128xf32, #tpu.memory_space<vmem>>, %arg3: memref<2x32xf32, #tpu.memory_space<vmem>>, %arg4: memref<2x1xf32, #tpu.memory_space<vmem>>, %arg5: memref<32x2xf32, #tpu.memory_space<vmem>>, %arg6: memref<32x1xf32, #tpu.memory_space<vmem>>, %arg7: memref<1x32x1xf32, #tpu.memory_space<vmem>>, %arg8: memref<32x128xf32, #tpu.memory_space<vmem>>) attributes {dimension_semantics = [#tpu.dimension_semantics<parallel>, #tpu.dimension_semantics<arbitrary>], iteration_bounds = array<i64: 2, 1>, scalar_prefetch = 0 : i64, scratch_operands = 1 : i64, tpu.core_type = #tpu.core_type<tc>, window_params = [{transform_indices = @transform_0, window_bounds = array<i64: 1, 32, 2, 128>}, {pipeline_mode = #tpu.pipeline_mode<synchronous>, transform_indices = @transform_1, window_bounds = array<i64: 2, 32>}, {pipeline_mode = #tpu.pipeline_mode<synchronous>, transform_indices = @transform_2, window_bounds = array<i64: 2, 1>}, {pipeline_mode = #tpu.pipeline_mode<synchronous>, transform_indices = @transform_3, window_bounds = array<i64: 32, 2>}, {pipeline_mode = #tpu.pipeline_mode<synchronous>, transform_indices = @transform_4, window_bounds = array<i64: 32, 1>}, {transform_indices = @transform_5, window_bounds = array<i64: 1, 32, 1>}]} {
    %c0_i32 = arith.constant 0 : i32
    %0 = arith.cmpi eq, %arg1, %c0_i32 : i32
    %1 = arith.extui %0 : i1 to i32
    %c0_i32_0 = arith.constant 0 : i32
    %2 = arith.cmpi ne, %1, %c0_i32_0 : i32
    scf.if %2 {
      %cst_10 = arith.constant 0.000000e+00 : f32
      %12 = vector.broadcast %cst_10 : f32 to vector<32x128xf32>
      %c0_11 = arith.constant 0 : index
      %c0_12 = arith.constant 0 : index
      %13 = vector.load %arg8[%c0_11, %c0_12] : memref<32x128xf32, #tpu.memory_space<vmem>>, vector<32x128xf32>
      tpu.vector_store %arg8[%c0_11, %c0_12], %12 {strides = array<i32>} : memref<32x128xf32, #tpu.memory_space<vmem>>, vector<32x128xf32>,
    } else {
    }
    %c0 = arith.constant 0 : index
    %c0_1 = arith.constant 0 : index
    %3 = vector.load %arg8[%c0, %c0_1] : memref<32x128xf32, #tpu.memory_space<vmem>>, vector<32x128xf32>
    %c0_2 = arith.constant 0 : index
    %c0_3 = arith.constant 0 : index
    %c0_4 = arith.constant 0 : index
    %c0_5 = arith.constant 0 : index
    %4 = vector.load %arg2[%c0_2, %c0_3, %c0_4, %c0_5] : memref<1x32x2x128xf32, #tpu.memory_space<vmem>>, vector<1x32x2x128xf32>
    %5 = vector.shape_cast %4 : vector<1x32x2x128xf32> to vector<32x2x128xf32>
    %cst = arith.constant dense<0.000000e+00> : vector<32x128xf32>
    %6 = vector.multi_reduction <add>, %5, %cst [1] : vector<32x2x128xf32> to vector<32x128xf32>
    %7 = arith.addf %3, %6 : vector<32x128xf32>
    %c0_6 = arith.constant 0 : index
    %c0_7 = arith.constant 0 : index
    %8 = vector.load %arg8[%c0_6, %c0_7] : memref<32x128xf32, #tpu.memory_space<vmem>>, vector<32x128xf32>
    tpu.vector_store %arg8[%c0_6, %c0_7], %7 {strides = array<i32>} : memref<32x128xf32, #tpu.memory_space<vmem>>, vector<32x128xf32>,
    %c0_i32_8 = arith.constant 0 : i32
    %9 = arith.cmpi eq, %arg1, %c0_i32_8 : i32
    %10 = arith.extui %9 : i1 to i32
    %c0_i32_9 = arith.constant 0 : i32
    %11 = arith.cmpi ne, %10, %c0_i32_9 : i32
    scf.if %11 {
      %c0_10 = arith.constant 0 : index
      %c0_11 = arith.constant 0 : index
      %12 = vector.load %arg8[%c0_10, %c0_11] : memref<32x128xf32, #tpu.memory_space<vmem>>, vector<32x128xf32>
      %cst_12 = arith.constant dense<0.000000e+00> : vector<32xf32>
      %13 = vector.multi_reduction <add>, %12, %cst_12 [1] : vector<32x128xf32> to vector<32xf32>
      %14 = vector.shape_cast %13 : vector<32xf32> to vector<32x1xf32>
      %cst_13 = arith.constant 3.906250e-03 : f32
      %15 = vector.broadcast %cst_13 : f32 to vector<32x1xf32>
      %16 = arith.mulf %14, %15 : vector<32x1xf32>
      %c0_14 = arith.constant 0 : index
      %c0_15 = arith.constant 0 : index
      %17 = vector.load %arg3[%c0_14, %c0_15] : memref<2x32xf32, #tpu.memory_space<vmem>>, vector<2x32xf32>
      %cst_16 = arith.constant dense<0.000000e+00> : vector<2x1xf32>
      %18 = tpu.matmul %17, %16, %cst_16 {dimension_numbers = #tpu.dot_dimension_numbers<[1], [0], [0], [1], [0, 0, 1, 1], [], []>} : vector<2x32xf32>, vector<32x1xf32>, vector<2x1xf32> -> vector<2x1xf32>
      %c0_17 = arith.constant 0 : index
      %c0_18 = arith.constant 0 : index
      %19 = vector.load %arg4[%c0_17, %c0_18] : memref<2x1xf32, #tpu.memory_space<vmem>>, vector<2x1xf32>
      %20 = arith.addf %18, %19 : vector<2x1xf32>
      %cst_19 = arith.constant 0.000000e+00 : f32
      %21 = vector.broadcast %cst_19 : f32 to vector<2x1xf32>
      %22 = arith.maximumf %20, %21 : vector<2x1xf32>
      %c0_20 = arith.constant 0 : index
      %c0_21 = arith.constant 0 : index
      %23 = vector.load %arg5[%c0_20, %c0_21] : memref<32x2xf32, #tpu.memory_space<vmem>>, vector<32x2xf32>
      %cst_22 = arith.constant dense<0.000000e+00> : vector<32x1xf32>
      %24 = tpu.matmul %23, %22, %cst_22 {dimension_numbers = #tpu.dot_dimension_numbers<[1], [0], [0], [1], [0, 0, 1, 1], [], []>} : vector<32x2xf32>, vector<2x1xf32>, vector<32x1xf32> -> vector<32x1xf32>
      %c0_23 = arith.constant 0 : index
      %c0_24 = arith.constant 0 : index
      %25 = vector.load %arg6[%c0_23, %c0_24] : memref<32x1xf32, #tpu.memory_space<vmem>>, vector<32x1xf32>
      %26 = arith.addf %24, %25 : vector<32x1xf32>
      %27 = arith.negf %26 : vector<32x1xf32>
      %28 = math.exp %27 : vector<32x1xf32>
      %cst_25 = arith.constant 1.000000e+00 : f32
      %29 = vector.broadcast %cst_25 : f32 to vector<32x1xf32>
      %30 = arith.addf %29, %28 : vector<32x1xf32>
      %31 = arith.divf %29, %30 : vector<32x1xf32>
      %32 = vector.shape_cast %31 : vector<32x1xf32> to vector<1x32x1xf32>
      %c0_26 = arith.constant 0 : index
      %c0_27 = arith.constant 0 : index
      %c0_28 = arith.constant 0 : index
      %33 = vector.load %arg7[%c0_26, %c0_27, %c0_28] : memref<1x32x1xf32, #tpu.memory_space<vmem>>, vector<1x32x1xf32>
      tpu.vector_store %arg7[%c0_26, %c0_27, %c0_28], %32 {strides = array<i32>} : memref<1x32x1xf32, #tpu.memory_space<vmem>>, vector<1x32x1xf32>,
    } else {
    }
    return
  }
  func.func @transform_0(%arg0: i32, %arg1: i32) -> (i32, i32, i32, i32) {
    %c0_i32 = arith.constant 0 : i32
    %c0_i32_0 = arith.constant 0 : i32
    %c0_i32_1 = arith.constant 0 : i32
    return %arg0, %c0_i32, %arg1, %c0_i32_0 : i32, i32, i32, i32
  }
  func.func @transform_1(%arg0: i32, %arg1: i32) -> (i32, i32) {
    %c0_i32 = arith.constant 0 : i32
    %c0_i32_0 = arith.constant 0 : i32
    %c0_i32_1 = arith.constant 0 : i32
    return %c0_i32, %c0_i32_0 : i32, i32
  }
  func.func @transform_2(%arg0: i32, %arg1: i32) -> (i32, i32) {
    %c0_i32 = arith.constant 0 : i32
    %c0_i32_0 = arith.constant 0 : i32
    %c0_i32_1 = arith.constant 0 : i32
    return %c0_i32, %c0_i32_0 : i32, i32
  }
  func.func @transform_3(%arg0: i32, %arg1: i32) -> (i32, i32) {
    %c0_i32 = arith.constant 0 : i32
    %c0_i32_0 = arith.constant 0 : i32
    %c0_i32_1 = arith.constant 0 : i32
    return %c0_i32, %c0_i32_0 : i32, i32
  }
  func.func @transform_4(%arg0: i32, %arg1: i32) -> (i32, i32) {
    %c0_i32 = arith.constant 0 : i32
    %c0_i32_0 = arith.constant 0 : i32
    %c0_i32_1 = arith.constant 0 : i32
    return %c0_i32, %c0_i32_0 : i32, i32
  }
  func.func @transform_5(%arg0: i32, %arg1: i32) -> (i32, i32, i32) {
    %c0_i32 = arith.constant 0 : i32
    %c0_i32_0 = arith.constant 0 : i32
    %c0_i32_1 = arith.constant 0 : i32
    return %arg0, %c0_i32, %c0_i32_0 : i32, i32, i32
  }
}

</mosaic_0001>

<llo_original>
// kernel: tpu_custom_call.1
$region0: #{tpu_custom_call.1}
  #allocation0 [shape = 'u32[]', space=smem, size = 0x4, offset = 0x4, fixed_abs, tag = 'smem constant byte address 0x4 - core index']
  #allocation1 [shape = 'u32[72,128]{1,0:T(1,128)}', space=vmem, size = 0x9000, scoped, tag = 'internal scratch']
  #allocation2 [shape = 'f32[32,128]{1,0:T(8,128)}', space=vmem, size = 0x4000, scoped, tag = 'scratch operand']
  %s0 = inlined_call_operand.hbm [shape: f32[2,32,2,128], index: 0, kind: input, shape index: {}]
  %s1 = inlined_call_operand.vmem [shape: f32[2,32], index: 1, kind: input, shape index: {}]
  %s2 = inlined_call_operand.vmem [shape: f32[2,1], index: 2, kind: input, shape index: {}]
  %s3 = inlined_call_operand.vmem [shape: f32[32,2], index: 3, kind: input, shape index: {}]
  %s4 = inlined_call_operand.vmem [shape: f32[32,1], index: 4, kind: input, shape index: {}]
  %s5 = inlined_call_operand.vmem [shape: f32[2,32,1], index: 5, kind: output, shape index: {}]
  %s6 = sld [smem:[#allocation0]]
  $region65: #{tpu_custom_call.1} parent=0
    _
  %s8 = ssub.s32 1, %s6
  %s9 = scalar_select 0, %s8, %s6
  $region1: #{tpu_custom_call.1} parent=0
    #allocation3 [shape = 'u8[65536]{0}', space=vmem, size = 0x10000, scoped, tag = 'input window, operand 0']
    #allocation4 [shape = 's32[2]{0}', space=sflag, size = 0x8, scoped, tag = 'scoped memory for tpu_custom_call.1']
    %10 = vsyncpa [#allocation4], 0
    %s11 = scalar_lea.sflag [#allocation4], 1
    %12 = vsyncpa %s11, 0
    loop: start=0, step=1, limit=4
    $region2: #{tpu_custom_call.1} parent=1 // loop_pre_header
      _
    $region3: #{tpu_custom_call.1} parent=1 // loop_header
      %s14 = sphi 0, %s18
      %p15 = scmp.ge.s32.totalorder %s14, 4
      %s21 = sphi 0, %s33
      %s22 = sphi 0, %s29
      %s23 = sphi 0, %s21
      %s24 = sphi 0, %s22
      %s25 = sphi 0, %s23
      %s26 = sphi 0, %s24
      %s38 = sphi 0, %s40
      %s41 = sphi 0, %s38
      %s42 = sphi 0, %s41
      %s58 = sphi 0, %s42
      %s62 = sphi 0, %s62
      %s64 = sphi 0, %s62
      %s65 = sphi 0, %s64
      %s79 = sphi 0, %s65
      %s83 = sphi 0, %s83
      %s85 = sphi 0, %s83
      %s86 = sphi 0, %s85
      %s100 = sphi 0, %s86
      %s104 = sphi 0, %s104
      %s106 = sphi 0, %s104
      %s107 = sphi 0, %s106
      %s121 = sphi 0, %s107
      %s125 = sphi 0, %s125
      %s127 = sphi 0, %s125
      %s128 = sphi 0, %s127
      %s142 = sphi 0, %s128
      %s148 = sphi 0, %s150
      %s151 = sphi 0, %s148
      %s152 = sphi 0, %s151
      %s168 = sphi 0, %s152
    $region4: #{tpu_custom_call.1} parent=1 // loop_header_branch
      %17 = sbr.rel (%p15) target = $region8
    $region5: #{tpu_custom_call.1} parent=1 // loop_body
      %s19 = ssub.s32 %s14, 1
      %s20 = ssub.s32 %s14, 2
      %s27 = sadd.s32 1, %s22
      %p28 = scmp.ge.s32.totalorder %s27, 1
      %s29 = scalar_select %p28, 0, %s27
      %s30 = sadd.s32 1, %s21
      %s31 = scalar_select %p28, %s30, %s21
      %p32 = scmp.ge.s32.totalorder %s31, 2
      %s33 = scalar_select %p32, 0, %s31
      %s34 = ssub.s32 %s21, %s33
      %s35 = ssub.s32 %s22, %s29
      %s36 = sor.u32 %s34, %s35
      %p37 = scmp.eq.s32.totalorder %s36, 0
      %s39 = sadd.s32 %s38, 1
      %s40 = scalar_select %p37, %s38, %s39
      %p43 = pneg %p37
      %p44 = scmp.eq.s32.totalorder %s14, 1
      %p45 = por %p43, %p44
      %p46 = scmp.ne.s32.totalorder %s38, %s41
      %p47 = scmp.eq.s32.totalorder %s14, 0
      %p48 = por %p46, %p47
      %p49 = scmp.ne.s32.totalorder %s38, %s41
      %p50 = scmp.eq.s32.totalorder %s19, 1
      %p51 = por %p49, %p50
      %p52 = scmp.ne.s32.totalorder %s41, %s42
      %p53 = scmp.eq.s32.totalorder %s19, 0
      %p54 = por %p52, %p53
      %p55 = scmp.ne.s32.totalorder %s41, %s42
      %p56 = scmp.eq.s32.totalorder %s20, 1
      %p57 = por %p55, %p56
      %p59 = scmp.ne.s32.totalorder %s42, %s58
      %p60 = scmp.eq.s32.totalorder %s20, 0
      %p61 = por %p59, %p60
      %s63 = sadd.s32 %s62, 1
      %p66 = scmp.eq.s32.totalorder %s14, 1
      %p67 = scmp.ne.s32.totalorder %s62, %s64
      %p68 = scmp.eq.s32.totalorder %s14, 0
      %p69 = por %p67, %p68
      %p70 = scmp.ne.s32.totalorder %s62, %s64
      %p71 = scmp.eq.s32.totalorder %s19, 1
      %p72 = por %p70, %p71
      %p73 = scmp.ne.s32.totalorder %s64, %s65
      %p74 = scmp.eq.s32.totalorder %s19, 0
      %p75 = por %p73, %p74
      %p76 = scmp.ne.s32.totalorder %s64, %s65
      %p77 = scmp.eq.s32.totalorder %s20, 1
      %p78 = por %p76, %p77
      %p80 = scmp.ne.s32.totalorder %s65, %s79
      %p81 = scmp.eq.s32.totalorder %s20, 0
      %p82 = por %p80, %p81
      %s84 = sadd.s32 %s83, 1
      %p87 = scmp.eq.s32.totalorder %s14, 1
      %p88 = scmp.ne.s32.totalorder %s83, %s85
      %p89 = scmp.eq.s32.totalorder %s14, 0
      %p90 = por %p88, %p89
      %p91 = scmp.ne.s32.totalorder %s83, %s85
      %p92 = scmp.eq.s32.totalorder %s19, 1
      %p93 = por %p91, %p92
      %p94 = scmp.ne.s32.totalorder %s85, %s86
      %p95 = scmp.eq.s32.totalorder %s19, 0
      %p96 = por %p94, %p95
      %p97 = scmp.ne.s32.totalorder %s85, %s86
      %p98 = scmp.eq.s32.totalorder %s20, 1
      %p99 = por %p97, %p98
      %p101 = scmp.ne.s32.totalorder %s86, %s100
      %p102 = scmp.eq.s32.totalorder %s20, 0
      %p103 = por %p101, %p102
      %s105 = sadd.s32 %s104, 1
      %p108 = scmp.eq.s32.totalorder %s14, 1
      %p109 = scmp.ne.s32.totalorder %s104, %s106
      %p110 = scmp.eq.s32.totalorder %s14, 0
      %p111 = por %p109, %p110
      %p112 = scmp.ne.s32.totalorder %s104, %s106
      %p113 = scmp.eq.s32.totalorder %s19, 1
      %p114 = por %p112, %p113
      %p115 = scmp.ne.s32.totalorder %s106, %s107
      %p116 = scmp.eq.s32.totalorder %s19, 0
      %p117 = por %p115, %p116
      %p118 = scmp.ne.s32.totalorder %s106, %s107
      %p119 = scmp.eq.s32.totalorder %s20, 1
      %p120 = por %p118, %p119
      %p122 = scmp.ne.s32.totalorder %s107, %s121
      %p123 = scmp.eq.s32.totalorder %s20, 0
      %p124 = por %p122, %p123
      %s126 = sadd.s32 %s125, 1
      %p129 = scmp.eq.s32.totalorder %s14, 1
      %p130 = scmp.ne.s32.totalorder %s125, %s127
      %p131 = scmp.eq.s32.totalorder %s14, 0
      %p132 = por %p130, %p131
      %p133 = scmp.ne.s32.totalorder %s125, %s127
      %p134 = scmp.eq.s32.totalorder %s19, 1
      %p135 = por %p133, %p134
      %p136 = scmp.ne.s32.totalorder %s127, %s128
      %p137 = scmp.eq.s32.totalorder %s19, 0
      %p138 = por %p136, %p137
      %p139 = scmp.ne.s32.totalorder %s127, %s128
      %p140 = scmp.eq.s32.totalorder %s20, 1
      %p141 = por %p139, %p140
      %p143 = scmp.ne.s32.totalorder %s128, %s142
      %p144 = scmp.eq.s32.totalorder %s20, 0
      %p145 = por %p143, %p144
      %s146 = ssub.s32 %s21, %s33
      %p147 = scmp.eq.s32.totalorder %s146, 0
      %s149 = sadd.s32 %s148, 1
      %s150 = scalar_select %p147, %s148, %s149
      %p153 = pneg %p147
      %p154 = scmp.eq.s32.totalorder %s14, 1
      %p155 = por %p153, %p154
      %p156 = scmp.ne.s32.totalorder %s148, %s151
      %p157 = scmp.eq.s32.totalorder %s14, 0
      %p158 = por %p156, %p157
      %p159 = scmp.ne.s32.totalorder %s148, %s151
      %p160 = scmp.eq.s32.totalorder %s19, 1
      %p161 = por %p159, %p160
      %p162 = scmp.ne.s32.totalorder %s151, %s152
      %p163 = scmp.eq.s32.totalorder %s19, 0
      %p164 = por %p162, %p163
      %p165 = scmp.ne.s32.totalorder %s151, %s152
      %p166 = scmp.eq.s32.totalorder %s20, 1
      %p167 = por %p165, %p166
      %p169 = scmp.ne.s32.totalorder %s152, %s168
      %p170 = scmp.eq.s32.totalorder %s20, 0
      %p171 = por %p169, %p170
      %p172 = scmp.le.s32.totalorder 1, %s14
      %p173 = scmp.lt.s32.totalorder %s14, 3
      %p174 = pnand %p172, %p173
      %p175 = pneg %p174
      // Predicated region
      $region9: #{tpu_custom_call.1} parent=5 // pred_check
        _
      $region10: #{tpu_custom_call.1} parent=5 // pred_check_branch
        %177 = sbr.rel (%p174) target = $region12
      $region11: #{tpu_custom_call.1} parent=5 // pred_region
        %s178 = ssub.s32 %s14, 1
        // Predicated region
        $region13: #{tpu_custom_call.1} parent=11 // pred_check
          %p179 = pneg %p75
        $region14: #{tpu_custom_call.1} parent=11 // pred_check_branch
          %181 = sbr.rel (%p179) target = $region16
        $region15: #{tpu_custom_call.1} parent=11 // pred_region
          _
        $region16: #{tpu_custom_call.1} parent=11 // pred_fallthru
          _
        // Predicated region
        $region17: #{tpu_custom_call.1} parent=11 // pred_check
          %p182 = pneg %p96
        $region18: #{tpu_custom_call.1} parent=11 // pred_check_branch
          %184 = sbr.rel (%p182) target = $region20
        $region19: #{tpu_custom_call.1} parent=11 // pred_region
          _
        $region20: #{tpu_custom_call.1} parent=11 // pred_fallthru
          _
        // Predicated region
        $region21: #{tpu_custom_call.1} parent=11 // pred_check
          %p185 = pneg %p117
        $region22: #{tpu_custom_call.1} parent=11 // pred_check_branch
          %187 = sbr.rel (%p185) target = $region24
        $region23: #{tpu_custom_call.1} parent=11 // pred_region
          _
        $region24: #{tpu_custom_call.1} parent=11 // pred_fallthru
          _
        // Predicated region
        $region25: #{tpu_custom_call.1} parent=11 // pred_check
          %p188 = pneg %p138
        $region26: #{tpu_custom_call.1} parent=11 // pred_check_branch
          %190 = sbr.rel (%p188) target = $region28
        $region27: #{tpu_custom_call.1} parent=11 // pred_region
          _
        $region28: #{tpu_custom_call.1} parent=11 // pred_fallthru
          _
      $region12: #{tpu_custom_call.1} parent=5 // pred_fallthru
        _
      %p191 = scmp.lt.s32.totalorder %s14, 2
      // Predicated region
      $region29: #{tpu_custom_call.1} parent=5 // pred_check
        %p192 = pneg %p191
      $region30: #{tpu_custom_call.1} parent=5 // pred_check_branch
        %194 = sbr.rel (%p192) target = $region32
      $region31: #{tpu_custom_call.1} parent=5 // pred_region
        // Predicated region
        $region33: #{tpu_custom_call.1} parent=31 // pred_check
          %p195 = pneg %p48
        $region34: #{tpu_custom_call.1} parent=31 // pred_check_branch
          %197 = sbr.rel (%p195) target = $region36
        $region35: #{tpu_custom_call.1} parent=31 // pred_region
          %s198 = sand.u32 %s38, 1
          %s199 = scalar_lea.sflag [#allocation4], %s198
          %s200 = sand.u32 %s38, 1
          %s201 = smul.addr %s200, 64
          %s202 = scalar_lea.vmem [#allocation3], %s201
          %204 = vsyncadd %s199, 0
          %s205 = smul.addr %s21, 32
          %s206 = sadd.s32 %s22, %s205
          %s207 = smul.addr %s206, 2
          %s208 = scalar_lea.hbm %s0, %s207
          %s209 = sshll.u32 %s208, 4
          %s210 = int_to_ptr.hbm [resolvable:$true] %s209
          %s211 = sshll.u32 %s202, 4
          %s212 = int_to_ptr.vmem [resolvable:$true] %s211
          %217 = dma.hbm_to_vmem [thread:$0]  %s210, 1024, %s212, %s199, 32, 32, 2
        $region36: #{tpu_custom_call.1} parent=31 // pred_fallthru
          _
      $region32: #{tpu_custom_call.1} parent=5 // pred_fallthru
        _
      %p218 = scmp.le.s32.totalorder 1, %s14
      %p219 = scmp.lt.s32.totalorder %s14, 3
      %p220 = pnand %p218, %p219
      %p221 = pneg %p220
      // Predicated region
      $region37: #{tpu_custom_call.1} parent=5 // pred_check
        _
      $region38: #{tpu_custom_call.1} parent=5 // pred_check_branch
        %223 = sbr.rel (%p220) target = $region40
      $region39: #{tpu_custom_call.1} parent=5 // pred_region
        %s224 = ssub.s32 %s14, 1
        %s225 = sand.u32 %s41, 1
        %s226 = scalar_lea.sflag [#allocation4], %s225
        %s227 = sand.u32 %s41, 1
        %s228 = smul.addr %s227, 64
        %s229 = scalar_lea.vmem [#allocation3], %s228
        // Predicated region
        $region41: #{tpu_custom_call.1} parent=39 // pred_check
          %p230 = pneg %p54
        $region42: #{tpu_custom_call.1} parent=39 // pred_check_branch
          %232 = sbr.rel (%p230) target = $region44
        $region43: #{tpu_custom_call.1} parent=39 // pred_region
          %234 = dma.done %s226, 1024
        $region44: #{tpu_custom_call.1} parent=39 // pred_fallthru
          _
        %s235 = sand.u32 %s41, 1
        %s236 = scalar_lea.sflag [#allocation4], %s235
        %s237 = sand.u32 %s41, 1
        %s238 = smul.addr %s237, 64
        %s239 = scalar_lea.vmem [#allocation3], %s238
        %p240 = pneg %p54
        %p241 = pneg %p51
        %p242 = pneg %p75
        %p243 = pneg %p72
        %p244 = pneg %p96
        %p245 = pneg %p93
        %p246 = pneg %p117
        %p247 = pneg %p114
        %p248 = pneg %p138
        %p249 = pneg %p135
        %p250 = pneg %p164
        %p251 = pneg %p161
        %p252 = scmp.lt.s32.totalorder %s23, 1
        %s253 = scalar_select %p252, %s23, 1
        %s254 = smul.addr %s253, 4
        %s255 = smul.addr %s254, 8
        %s256 = scalar_lea.vmem %s5, %s255
        %p257 = scmp.lt.s32.totalorder %s23, 1
        %s258 = scalar_select %p257, %s23, 1
        %s259 = smul.addr %s258, 4
        %s260 = smul.addr %s259, 8
        %s261 = scalar_lea.vmem %s5, %s260
        %p262 = scmp.eq.s32.totalorder %s24, 0
        // Predicated region
        $region45: #{tpu_custom_call.1} parent=39 // pred_check
          %p263 = pneg %p262
        $region46: #{tpu_custom_call.1} parent=39 // pred_check_branch
          %265 = sbr.rel (%p263) target = $region48
        $region47: #{tpu_custom_call.1} parent=39 // pred_region
          %266 = vst [vmem:[#allocation2] sm:$0xff] 0.0
          %267 = vst [vmem:[#allocation2 + $0x8] sm:$0xff] 0.0
          %268 = vst [vmem:[#allocation2 + $0x10] sm:$0xff] 0.0
          %269 = vst [vmem:[#allocation2 + $0x18] sm:$0xff] 0.0
        $region48: #{tpu_custom_call.1} parent=39 // pred_fallthru
          _
        %v270 = vld [vmem:[#allocation2] sm:$0xff]
        %v271 = vld [vmem:[#allocation2 + $0x8] sm:$0xff]
        %v272 = vld [vmem:[#allocation2 + $0x10] sm:$0xff]
        %v273 = vld [vmem:[#allocation2 + $0x18] sm:$0xff]
        %v274 = vld [vmem:[%s229] sm:$0x3]
        %v275 = vld [vmem:[%s229 + $0x2] sm:$0x3]
        %v276 = vld [vmem:[%s229 + $0x4] sm:$0x3]
        %v277 = vld [vmem:[%s229 + $0x6] sm:$0x3]
        %v278 = vld [vmem:[%s229 + $0x8] sm:$0x3]
        %v279 = vld [vmem:[%s229 + $0xa] sm:$0x3]
        %v280 = vld [vmem:[%s229 + $0xc] sm:$0x3]
        %v281 = vld [vmem:[%s229 + $0xe] sm:$0x3]
        %v282 = vld [vmem:[%s229 + $0x10] sm:$0x3]
        %v283 = vld [vmem:[%s229 + $0x12] sm:$0x3]
        %v284 = vld [vmem:[%s229 + $0x14] sm:$0x3]
        %v285 = vld [vmem:[%s229 + $0x16] sm:$0x3]
        %v286 = vld [vmem:[%s229 + $0x18] sm:$0x3]
        %v287 = vld [vmem:[%s229 + $0x1a] sm:$0x3]
        %v288 = vld [vmem:[%s229 + $0x1c] sm:$0x3]
        %v289 = vld [vmem:[%s229 + $0x1e] sm:$0x3]
        %v290 = vld [vmem:[%s229 + $0x20] sm:$0x3]
        %v291 = vld [vmem:[%s229 + $0x22] sm:$0x3]
        %v292 = vld [vmem:[%s229 + $0x24] sm:$0x3]
        %v293 = vld [vmem:[%s229 + $0x26] sm:$0x3]
        %v294 = vld [vmem:[%s229 + $0x28] sm:$0x3]
        %v295 = vld [vmem:[%s229 + $0x2a] sm:$0x3]
        %v296 = vld [vmem:[%s229 + $0x2c] sm:$0x3]
        %v297 = vld [vmem:[%s229 + $0x2e] sm:$0x3]
        %v298 = vld [vmem:[%s229 + $0x30] sm:$0x3]
        %v299 = vld [vmem:[%s229 + $0x32] sm:$0x3]
        %v300 = vld [vmem:[%s229 + $0x34] sm:$0x3]
        %v301 = vld [vmem:[%s229 + $0x36] sm:$0x3]
        %v302 = vld [vmem:[%s229 + $0x38] sm:$0x3]
        %v303 = vld [vmem:[%s229 + $0x3a] sm:$0x3]
        %v304 = vld [vmem:[%s229 + $0x3c] sm:$0x3]
        %v305 = vld [vmem:[%s229 + $0x3e] sm:$0x3]
        %vm306 = vcmask 1041408
        %v307 = vsel %vm306, %v274, 0.0
        %v308 = vrot.slane %v307, 4
        %v309 = vadd.f32 %v307, %v308
        %v310 = vrot.slane %v309, 2
        %v311 = vadd.f32 %v309, %v310
        %v312 = vrot.slane %v311, 1
        %v313 = vadd.f32 %v311, %v312
        %v314 = vsel %vm306, %v275, 0.0
        %v315 = vrot.slane %v314, 4
        %v316 = vadd.f32 %v314, %v315
        %v317 = vrot.slane %v316, 2
        %v318 = vadd.f32 %v316, %v317
        %v319 = vrot.slane %v318, 1
        %v320 = vadd.f32 %v318, %v319
        %v321 = vsel %vm306, %v276, 0.0
        %v322 = vrot.slane %v321, 4
        %v323 = vadd.f32 %v321, %v322
        %v324 = vrot.slane %v323, 2
        %v325 = vadd.f32 %v323, %v324
        %v326 = vrot.slane %v325, 1
        %v327 = vadd.f32 %v325, %v326
        %v328 = vsel %vm306, %v277, 0.0
        %v329 = vrot.slane %v328, 4
        %v330 = vadd.f32 %v328, %v329
        %v331 = vrot.slane %v330, 2
        %v332 = vadd.f32 %v330, %v331
        %v333 = vrot.slane %v332, 1
        %v334 = vadd.f32 %v332, %v333
        %v335 = vsel %vm306, %v278, 0.0
        %v336 = vrot.slane %v335, 4
        %v337 = vadd.f32 %v335, %v336
        %v338 = vrot.slane %v337, 2
        %v339 = vadd.f32 %v337, %v338
        %v340 = vrot.slane %v339, 1
        %v341 = vadd.f32 %v339, %v340
        %v342 = vsel %vm306, %v279, 0.0
        %v343 = vrot.slane %v342, 4
        %v344 = vadd.f32 %v342, %v343
        %v345 = vrot.slane %v344, 2
        %v346 = vadd.f32 %v344, %v345
        %v347 = vrot.slane %v346, 1
        %v348 = vadd.f32 %v346, %v347
        %v349 = vsel %vm306, %v280, 0.0
        %v350 = vrot.slane %v349, 4
        %v351 = vadd.f32 %v349, %v350
        %v352 = vrot.slane %v351, 2
        %v353 = vadd.f32 %v351, %v352
        %v354 = vrot.slane %v353, 1
        %v355 = vadd.f32 %v353, %v354
        %v356 = vsel %vm306, %v281, 0.0
        %v357 = vrot.slane %v356, 4
        %v358 = vadd.f32 %v356, %v357
        %v359 = vrot.slane %v358, 2
        %v360 = vadd.f32 %v358, %v359
        %v361 = vrot.slane %v360, 1
        %v362 = vadd.f32 %v360, %v361
        %v363 = vsel %vm306, %v282, 0.0
        %v364 = vrot.slane %v363, 4
        %v365 = vadd.f32 %v363, %v364
        %v366 = vrot.slane %v365, 2
        %v367 = vadd.f32 %v365, %v366
        %v368 = vrot.slane %v367, 1
        %v369 = vadd.f32 %v367, %v368
        %v370 = vsel %vm306, %v283, 0.0
        %v371 = vrot.slane %v370, 4
        %v372 = vadd.f32 %v370, %v371
        %v373 = vrot.slane %v372, 2
        %v374 = vadd.f32 %v372, %v373
        %v375 = vrot.slane %v374, 1
        %v376 = vadd.f32 %v374, %v375
        %v377 = vsel %vm306, %v284, 0.0
        %v378 = vrot.slane %v377, 4
        %v379 = vadd.f32 %v377, %v378
        %v380 = vrot.slane %v379, 2
        %v381 = vadd.f32 %v379, %v380
        %v382 = vrot.slane %v381, 1
        %v383 = vadd.f32 %v381, %v382
        %v384 = vsel %vm306, %v285, 0.0
        %v385 = vrot.slane %v384, 4
        %v386 = vadd.f32 %v384, %v385
        %v387 = vrot.slane %v386, 2
        %v388 = vadd.f32 %v386, %v387
        %v389 = vrot.slane %v388, 1
        %v390 = vadd.f32 %v388, %v389
        %v391 = vsel %vm306, %v286, 0.0
        %v392 = vrot.slane %v391, 4
        %v393 = vadd.f32 %v391, %v392
        %v394 = vrot.slane %v393, 2
        %v395 = vadd.f32 %v393, %v394
        %v396 = vrot.slane %v395, 1
        %v397 = vadd.f32 %v395, %v396
        %v398 = vsel %vm306, %v287, 0.0
        %v399 = vrot.slane %v398, 4
        %v400 = vadd.f32 %v398, %v399
        %v401 = vrot.slane %v400, 2
        %v402 = vadd.f32 %v400, %v401
        %v403 = vrot.slane %v402, 1
        %v404 = vadd.f32 %v402, %v403
        %v405 = vsel %vm306, %v288, 0.0
        %v406 = vrot.slane %v405, 4
        %v407 = vadd.f32 %v405, %v406
        %v408 = vrot.slane %v407, 2
        %v409 = vadd.f32 %v407, %v408
        %v410 = vrot.slane %v409, 1
        %v411 = vadd.f32 %v409, %v410
        %v412 = vsel %vm306, %v289, 0.0
        %v413 = vrot.slane %v412, 4
        %v414 = vadd.f32 %v412, %v413
        %v415 = vrot.slane %v414, 2
        %v416 = vadd.f32 %v414, %v415
        %v417 = vrot.slane %v416, 1
        %v418 = vadd.f32 %v416, %v417
        %v419 = vsel %vm306, %v290, 0.0
        %v420 = vrot.slane %v419, 4
        %v421 = vadd.f32 %v419, %v420
        %v422 = vrot.slane %v421, 2
        %v423 = vadd.f32 %v421, %v422
        %v424 = vrot.slane %v423, 1
        %v425 = vadd.f32 %v423, %v424
        %v426 = vsel %vm306, %v291, 0.0
        %v427 = vrot.slane %v426, 4
        %v428 = vadd.f32 %v426, %v427
        %v429 = vrot.slane %v428, 2
        %v430 = vadd.f32 %v428, %v429
        %v431 = vrot.slane %v430, 1
        %v432 = vadd.f32 %v430, %v431
        %v433 = vsel %vm306, %v292, 0.0
        %v434 = vrot.slane %v433, 4
        %v435 = vadd.f32 %v433, %v434
        %v436 = vrot.slane %v435, 2
        %v437 = vadd.f32 %v435, %v436
        %v438 = vrot.slane %v437, 1
        %v439 = vadd.f32 %v437, %v438
        %v440 = vsel %vm306, %v293, 0.0
        %v441 = vrot.slane %v440, 4
        %v442 = vadd.f32 %v440, %v441
        %v443 = vrot.slane %v442, 2
        %v444 = vadd.f32 %v442, %v443
        %v445 = vrot.slane %v444, 1
        %v446 = vadd.f32 %v444, %v445
        %v447 = vsel %vm306, %v294, 0.0
        %v448 = vrot.slane %v447, 4
        %v449 = vadd.f32 %v447, %v448
        %v450 = vrot.slane %v449, 2
        %v451 = vadd.f32 %v449, %v450
        %v452 = vrot.slane %v451, 1
        %v453 = vadd.f32 %v451, %v452
        %v454 = vsel %vm306, %v295, 0.0
        %v455 = vrot.slane %v454, 4
        %v456 = vadd.f32 %v454, %v455
        %v457 = vrot.slane %v456, 2
        %v458 = vadd.f32 %v456, %v457
        %v459 = vrot.slane %v458, 1
        %v460 = vadd.f32 %v458, %v459
        %v461 = vsel %vm306, %v296, 0.0
        %v462 = vrot.slane %v461, 4
        %v463 = vadd.f32 %v461, %v462
        %v464 = vrot.slane %v463, 2
        %v465 = vadd.f32 %v463, %v464
        %v466 = vrot.slane %v465, 1
        %v467 = vadd.f32 %v465, %v466
        %v468 = vsel %vm306, %v297, 0.0
        %v469 = vrot.slane %v468, 4
        %v470 = vadd.f32 %v468, %v469
        %v471 = vrot.slane %v470, 2
        %v472 = vadd.f32 %v470, %v471
        %v473 = vrot.slane %v472, 1
        %v474 = vadd.f32 %v472, %v473
        %v475 = vsel %vm306, %v298, 0.0
        %v476 = vrot.slane %v475, 4
        %v477 = vadd.f32 %v475, %v476
        %v478 = vrot.slane %v477, 2
        %v479 = vadd.f32 %v477, %v478
        %v480 = vrot.slane %v479, 1
        %v481 = vadd.f32 %v479, %v480
        %v482 = vsel %vm306, %v299, 0.0
        %v483 = vrot.slane %v482, 4
        %v484 = vadd.f32 %v482, %v483
        %v485 = vrot.slane %v484, 2
        %v486 = vadd.f32 %v484, %v485
        %v487 = vrot.slane %v486, 1
        %v488 = vadd.f32 %v486, %v487
        %v489 = vsel %vm306, %v300, 0.0
        %v490 = vrot.slane %v489, 4
        %v491 = vadd.f32 %v489, %v490
        %v492 = vrot.slane %v491, 2
        %v493 = vadd.f32 %v491, %v492
        %v494 = vrot.slane %v493, 1
        %v495 = vadd.f32 %v493, %v494
        %v496 = vsel %vm306, %v301, 0.0
        %v497 = vrot.slane %v496, 4
        %v498 = vadd.f32 %v496, %v497
        %v499 = vrot.slane %v498, 2
        %v500 = vadd.f32 %v498, %v499
        %v501 = vrot.slane %v500, 1
        %v502 = vadd.f32 %v500, %v501
        %v503 = vsel %vm306, %v302, 0.0
        %v504 = vrot.slane %v503, 4
        %v505 = vadd.f32 %v503, %v504
        %v506 = vrot.slane %v505, 2
        %v507 = vadd.f32 %v505, %v506
        %v508 = vrot.slane %v507, 1
        %v509 = vadd.f32 %v507, %v508
        %v510 = vsel %vm306, %v303, 0.0
        %v511 = vrot.slane %v510, 4
        %v512 = vadd.f32 %v510, %v511
        %v513 = vrot.slane %v512, 2
        %v514 = vadd.f32 %v512, %v513
        %v515 = vrot.slane %v514, 1
        %v516 = vadd.f32 %v514, %v515
        %v517 = vsel %vm306, %v304, 0.0
        %v518 = vrot.slane %v517, 4
        %v519 = vadd.f32 %v517, %v518
        %v520 = vrot.slane %v519, 2
        %v521 = vadd.f32 %v519, %v520
        %v522 = vrot.slane %v521, 1
        %v523 = vadd.f32 %v521, %v522
        %v524 = vsel %vm306, %v305, 0.0
        %v525 = vrot.slane %v524, 4
        %v526 = vadd.f32 %v524, %v525
        %v527 = vrot.slane %v526, 2
        %v528 = vadd.f32 %v526, %v527
        %v529 = vrot.slane %v528, 1
        %v530 = vadd.f32 %v528, %v529
        %vm563 = vcmask 1041409
        %v564 = vsel %vm563, %v320, %v313
        %vm565 = vcmask 1042434
        %v566 = vsel %vm565, %v327, %v564
        %vm567 = vcmask 1043459
        %v568 = vsel %vm567, %v334, %v566
        %vm569 = vcmask 1044484
        %v570 = vsel %vm569, %v341, %v568
        %vm571 = vcmask 1045509
        %v572 = vsel %vm571, %v348, %v570
        %vm573 = vcmask 1046534
        %v574 = vsel %vm573, %v355, %v572
        %vm575 = vcmask 1047559
        %v576 = vsel %vm575, %v362, %v574
        %v577 = vsel %vm563, %v376, %v369
        %v578 = vsel %vm565, %v383, %v577
        %v579 = vsel %vm567, %v390, %v578
        %v580 = vsel %vm569, %v397, %v579
        %v581 = vsel %vm571, %v404, %v580
        %v582 = vsel %vm573, %v411, %v581
        %v583 = vsel %vm575, %v418, %v582
        %v584 = vsel %vm563, %v432, %v425
        %v585 = vsel %vm565, %v439, %v584
        %v586 = vsel %vm567, %v446, %v585
        %v587 = vsel %vm569, %v453, %v586
        %v588 = vsel %vm571, %v460, %v587
        %v589 = vsel %vm573, %v467, %v588
        %v590 = vsel %vm575, %v474, %v589
        %v591 = vsel %vm563, %v488, %v481
        %v592 = vsel %vm565, %v495, %v591
        %v593 = vsel %vm567, %v502, %v592
        %v594 = vsel %vm569, %v509, %v593
        %v595 = vsel %vm571, %v516, %v594
        %v596 = vsel %vm573, %v523, %v595
        %v597 = vsel %vm575, %v530, %v596
        %v602 = vadd.f32 %v270, %v576
        %v603 = vadd.f32 %v271, %v583
        %v604 = vadd.f32 %v272, %v590
        %v605 = vadd.f32 %v273, %v597
        %606 = vst [vmem:[#allocation2] sm:$0xff] %v602
        %607 = vst [vmem:[#allocation2 + $0x8] sm:$0xff] %v603
        %608 = vst [vmem:[#allocation2 + $0x10] sm:$0xff] %v604
        %609 = vst [vmem:[#allocation2 + $0x18] sm:$0xff] %v605
        // Predicated region
        $region49: #{tpu_custom_call.1} parent=39 // pred_check
          %p610 = pneg %p262
        $region50: #{tpu_custom_call.1} parent=39 // pred_check_branch
          %612 = sbr.rel (%p610) target = $region52
        $region51: #{tpu_custom_call.1} parent=39 // pred_region
          %v613 = vld [vmem:[#allocation2] sm:$0xff]
          %v614 = vld [vmem:[#allocation2 + $0x8] sm:$0xff]
          %v615 = vld [vmem:[#allocation2 + $0x10] sm:$0xff]
          %v616 = vld [vmem:[#allocation2 + $0x18] sm:$0xff]
          %617 = vadd.xlane.f32.xlu0 %v613
          %v618 = vpop.xlane.xlu0 %617
          %619 = vadd.xlane.f32.xlu0 %v614
          %v620 = vpop.xlane.xlu0 %619
          %621 = vadd.xlane.f32.xlu0 %v615
          %v622 = vpop.xlane.xlu0 %621
          %623 = vadd.xlane.f32.xlu0 %v616
          %v624 = vpop.xlane.xlu0 %623
          %v625 = vmul.f32 %v618, 0.00390625
          %v626 = vmul.f32 %v620, 0.00390625
          %v627 = vmul.f32 %v622, 0.00390625
          %v628 = vmul.f32 %v624, 0.00390625
          %v629 = vld [vmem:[%s1] sm:$0x3]
          %v630 = vld [vmem:[%s2] sm:$0x3]
          %vm631 = vcmask 261120
          %v633 = vsel %vm631, %v629, 0
          %635 = vmatpush.msra.mxu0 0.0
          %636 = vmatpush.msra.mxu0 0.0
          %637 = vmatpush.msra.mxu0 0.0
          %638 = vmatpush.msra.mxu0 0.0
          %639 = vmatpush.msra.mxu0 0.0
          %640 = vmatpush.msra.mxu0 0.0
          %641 = vmatpush.msra.mxu0 0.0
          %642 = vmatpush.msra.mxu0 0.0
          %643 = vmatpush.msra.mxu0 0.0
          %644 = vmatpush.msra.mxu0 0.0
          %645 = vmatpush.msra.mxu0 0.0
          %646 = vmatpush.msra.mxu0 0.0
          %647 = vmatpush.msra.mxu0 %v628
          %648 = vmatpush.msra.mxu0 %v627
          %649 = vmatpush.msra.mxu0 %v626
          %650 = vmatpush.msra.mxu0 %v625
          %651 = vmatmul.f32.gmra.mxu0 %v633
          %v652 = vpop.f32.mrf.mxu0
          %v653 = vadd.f32 %v630, %v652
          %654 = vdwg.mxu0
          %v655 = vmax.f32 %v653, 0.0
          %v656 = vld [vmem:[%s3] sm:$0xff]
          %v657 = vld [vmem:[%s3 + $0x8] sm:$0xff]
          %v658 = vld [vmem:[%s3 + $0x10] sm:$0xff]
          %v659 = vld [vmem:[%s3 + $0x18] sm:$0xff]
          %v660 = vld [vmem:[%s4] sm:$0xff]
          %v661 = vld [vmem:[%s4 + $0x8] sm:$0xff]
          %v662 = vld [vmem:[%s4 + $0x10] sm:$0xff]
          %v663 = vld [vmem:[%s4 + $0x18] sm:$0xff]
          %vm664 = vcmask 15360
          %v666 = vsel %vm664, %v656, 0
          %v669 = vsel %vm664, %v657, 0
          %v672 = vsel %vm664, %v658, 0
          %v675 = vsel %vm664, %v659, 0
          %v678 = vsel %vm306, %v655, 0
          %680 = vmatpush.msra.mxu0 0.0
          %681 = vmatpush.msra.mxu0 0.0
          %682 = vmatpush.msra.mxu0 0.0
          %683 = vmatpush.msra.mxu0 0.0
          %684 = vmatpush.msra.mxu0 0.0
          %685 = vmatpush.msra.mxu0 0.0
          %686 = vmatpush.msra.mxu0 0.0
          %687 = vmatpush.msra.mxu0 0.0
          %688 = vmatpush.msra.mxu0 0.0
          %689 = vmatpush.msra.mxu0 0.0
          %690 = vmatpush.msra.mxu0 0.0
          %691 = vmatpush.msra.mxu0 0.0
          %692 = vmatpush.msra.mxu0 0.0
          %693 = vmatpush.msra.mxu0 0.0
          %694 = vmatpush.msra.mxu0 0.0
          %695 = vmatpush.msra.mxu0 %v678
          %696 = vmatmul.f32.gmra.mxu0 %v666
          %v697 = vpop.f32.mrf.mxu0
          %v698 = vadd.f32 %v660, %v697
          %699 = vmatmul.f32.gmra.mxu0 %v669
          %v700 = vpop.f32.mrf.mxu0
          %v701 = vadd.f32 %v661, %v700
          %702 = vmatmul.f32.gmra.mxu0 %v672
          %v703 = vpop.f32.mrf.mxu0
          %v704 = vadd.f32 %v662, %v703
          %705 = vmatmul.f32.gmra.mxu0 %v675
          %v706 = vpop.f32.mrf.mxu0
          %v707 = vadd.f32 %v663, %v706
          %708 = vdwg.mxu0
          %v709 = vxor.u32 %v698, 2147483648
          %v710 = vxor.u32 %v701, 2147483648
          %v711 = vxor.u32 %v704, 2147483648
          %v712 = vxor.u32 %v707, 2147483648
          %v713 = vmul.f32 %v709, 1.442695
          %v714 = vpow.pop %v713
          %v715 = vmul.f32 %v710, 1.442695
          %v716 = vpow.pop %v715
          %v717 = vmul.f32 %v711, 1.442695
          %v718 = vpow.pop %v717
          %v719 = vmul.f32 %v712, 1.442695
          %v720 = vpow.pop %v719
          %v721 = vadd.f32 %v714, 1.0
          %v722 = vadd.f32 %v716, 1.0
          %v723 = vadd.f32 %v718, 1.0
          %v724 = vadd.f32 %v720, 1.0
          %v725 = vrcp.pop %v721
          %v726 = vmul.f32 %v721, %v725
          %v727 = vsub.f32 1.0, %v726
          %v728 = vmul.f32 %v725, %v727
          %v729 = vadd.f32 %v725, %v728
          %vm730 = vweird.f32 %v721
          %vm731 = vweird.f32 %v725
          %vm732 = vmor %vm730, %vm731
          %v733 = vsel %vm732, %v725, %v729
          %v734 = vand.u32 2147483647, %v721
          %vm735 = vcmp.eq.f32.partialorder %v734, 8.507059e+37
          %v736 = vand.u32 %v721, 2147483648
          %v737 = vor.u32 1.1754944e-38, %v736
          %v738 = vsel %vm735, %v737, %v733
          %v739 = vmul.f32 1.0, %v738
          %v740 = vrcp.pop %v722
          %v741 = vmul.f32 %v722, %v740
          %v742 = vsub.f32 1.0, %v741
          %v743 = vmul.f32 %v740, %v742
          %v744 = vadd.f32 %v740, %v743
          %vm745 = vweird.f32 %v722
          %vm746 = vweird.f32 %v740
          %vm747 = vmor %vm745, %vm746
          %v748 = vsel %vm747, %v740, %v744
          %v749 = vand.u32 2147483647, %v722
          %vm750 = vcmp.eq.f32.partialorder %v749, 8.507059e+37
          %v751 = vand.u32 %v722, 2147483648
          %v752 = vor.u32 1.1754944e-38, %v751
          %v753 = vsel %vm750, %v752, %v748
          %v754 = vmul.f32 1.0, %v753
          %v755 = vrcp.pop %v723
          %v756 = vmul.f32 %v723, %v755
          %v757 = vsub.f32 1.0, %v756
          %v758 = vmul.f32 %v755, %v757
          %v759 = vadd.f32 %v755, %v758
          %vm760 = vweird.f32 %v723
          %vm761 = vweird.f32 %v755
          %vm762 = vmor %vm760, %vm761
          %v763 = vsel %vm762, %v755, %v759
          %v764 = vand.u32 2147483647, %v723
          %vm765 = vcmp.eq.f32.partialorder %v764, 8.507059e+37
          %v766 = vand.u32 %v723, 2147483648
          %v767 = vor.u32 1.1754944e-38, %v766
          %v768 = vsel %vm765, %v767, %v763
          %v769 = vmul.f32 1.0, %v768
          %v770 = vrcp.pop %v724
          %v771 = vmul.f32 %v724, %v770
          %v772 = vsub.f32 1.0, %v771
          %v773 = vmul.f32 %v770, %v772
          %v774 = vadd.f32 %v770, %v773
          %vm775 = vweird.f32 %v724
          %vm776 = vweird.f32 %v770
          %vm777 = vmor %vm775, %vm776
          %v778 = vsel %vm777, %v770, %v774
          %v779 = vand.u32 2147483647, %v724
          %vm780 = vcmp.eq.f32.partialorder %v779, 8.507059e+37
          %v781 = vand.u32 %v724, 2147483648
          %v782 = vor.u32 1.1754944e-38, %v781
          %v783 = vsel %vm780, %v782, %v778
          %v784 = vmul.f32 1.0, %v783
          %vm785 = vcmask 7168
          %786 = vst.msk [vmem:[%s261] sm:$0xff] %vm785, %v739
          %787 = vst.msk [vmem:[%s261 + $0x8] sm:$0xff] %vm785, %v754
          %788 = vst.msk [vmem:[%s261 + $0x10] sm:$0xff] %vm785, %v769
          %789 = vst.msk [vmem:[%s261 + $0x18] sm:$0xff] %vm785, %v784
        $region52: #{tpu_custom_call.1} parent=39 // pred_fallthru
          _
        %p790 = scmp.lt.s32.totalorder %s23, 1
        %s791 = scalar_select %p790, %s23, 1
        %s792 = smul.addr %s791, 4
        %s793 = smul.addr %s792, 8
        %s794 = scalar_lea.vmem %s5, %s793
        // Predicated region
        $region53: #{tpu_custom_call.1} parent=39 // pred_check
          %p795 = pneg %p161
        $region54: #{tpu_custom_call.1} parent=39 // pred_check_branch
          %797 = sbr.rel (%p795) target = $region56
        $region55: #{tpu_custom_call.1} parent=39 // pred_region
          _
        $region56: #{tpu_custom_call.1} parent=39 // pred_fallthru
          _
      $region40: #{tpu_custom_call.1} parent=5 // pred_fallthru
        _
      %p798 = scmp.le.s32.totalorder 2, %s14
      // Predicated region
      $region57: #{tpu_custom_call.1} parent=5 // pred_check
        %p799 = pneg %p798
      $region58: #{tpu_custom_call.1} parent=5 // pred_check_branch
        %801 = sbr.rel (%p799) target = $region60
      $region59: #{tpu_custom_call.1} parent=5 // pred_region
        %s802 = ssub.s32 %s14, 2
        // Predicated region
        $region61: #{tpu_custom_call.1} parent=59 // pred_check
          %p803 = pneg %p167
        $region62: #{tpu_custom_call.1} parent=59 // pred_check_branch
          %805 = sbr.rel (%p803) target = $region64
        $region63: #{tpu_custom_call.1} parent=59 // pred_region
          %p806 = scmp.lt.s32.totalorder %s25, 1
          %s807 = scalar_select %p806, %s25, 1
          %s808 = smul.addr %s807, 4
          %s809 = smul.addr %s808, 8
          %s810 = scalar_lea.vmem %s5, %s809
        $region64: #{tpu_custom_call.1} parent=59 // pred_fallthru
          _
      $region60: #{tpu_custom_call.1} parent=5 // pred_fallthru
        _
    $region6: #{tpu_custom_call.1} parent=1 // loop_footer
      %s18 = sadd.s32 1, %s14
    $region7: #{tpu_custom_call.1} parent=1 // loop_footer_branch
      %13 = sbr.rel target = $region3
    $region8: #{tpu_custom_call.1} parent=1 // loop_exit
      _
    %811 = vsyncpa [#allocation4], 1
    %s812 = scalar_lea.sflag [#allocation4], 1
    %813 = vsyncpa %s812, 1

</llo_original>
